<compile_context>
chip_gen: v5e
topology: v5e:2x2
jax: 0.10.0
libtpu: 0.0.40
codegen_flags: <defaults>
</compile_context>

<pallas_src>
import jax
import jax.numpy as jnp
from jax.experimental import pallas as pl
from jax.experimental.pallas import tpu as pltpu

STATE_DIM = 4
HIDDEN = 128
N_ACTIONS = 2
NEG_SLOPE = 0.01         # torch.nn.LeakyReLU default


def _leaky_relu(x):
    return jnp.where(x > 0, x, NEG_SLOPE * x)


def _round_up(n, m):
    return ((n + m - 1) // m) * m


def mlp_kernel(x_ref, w1_ref, b1_ref, w2_ref, b2_ref, w3t_ref, b3_ref, o_ref):
    x = x_ref[...]                                   # [TB, 4]  f32
    w1 = w1_ref[...]                                 # [4, 128] f32
    tb = x.shape[0]

    # Layer 1: K=4 -> 4 broadcast FMAs on the VPU instead of a near-empty MXU pass.
    h1 = jnp.broadcast_to(b1_ref[...], (tb, HIDDEN))            # [TB, 128]
    for i in range(STATE_DIM):                                   # static unroll
        h1 = h1 + x[:, i:i + 1] * w1[i:i + 1, :]
    h1 = _leaky_relu(h1)

    # Layer 2: [TB,128] @ [128,128] on the MXU, f32 accumulate.
    # w2 may be pre-cast to bf16 by prepare_params (v6e/v7x fast path).
    w2 = w2_ref[...]
    h2 = jnp.dot(h1.astype(w2.dtype), w2,
                 preferred_element_type=jnp.float32) + b2_ref[...]
    h2 = _leaky_relu(h2)

    # Layer 3: only 2 real outputs -> VPU multiply + XLU lane-sum (no MXU pass,
    # no padded 128-wide writeback).
    w3t = w3t_ref[...].astype(jnp.float32)           # [2, 128] rows lane-contiguous
    b3 = b3_ref[...]                                 # [1, 2]
    cols = [jnp.sum(h2 * w3t[j:j + 1, :], axis=-1, keepdims=True)
            for j in range(N_ACTIONS)]               # 2 x [TB, 1]
    logits = jnp.concatenate(cols, axis=-1) + b3     # [TB, 2]
    o_ref[...] = logits.astype(o_ref.dtype)


def prepare_params(params, *, use_bf16=False):
    """One-time prep: transpose w3 to lane-contiguous rows; optionally cast the
    layer-2 weight to bf16 for the MXU fast path on v6e/v7x."""
    w1, b1, w2, b2, w3, b3 = params
    w3t = jnp.transpose(w3)                          # [N_ACTIONS, HIDDEN]
    if use_bf16:
        w2 = w2.astype(jnp.bfloat16)
    return (w1, b1, w2, b2, w3t, b3)


def cartpole_agent_forward(x, prepared_params, *, block_batch=1024):
    """x: [batch, 4] float32 -> logits: [batch, 2] float32.

    `prepared_params` comes from prepare_params()."""
    w1, b1, w2, b2, w3t, b3 = prepared_params
    batch = x.shape[0]

    # Batch tile: multiple of 8, capped at block_batch; when the batch is large
    # enough, cap at ceil(batch/2) so there are >= 2 grid steps (v7x megacore).
    tb = _round_up(min(block_batch, max(batch, 1)), 8)
    half = _round_up((batch + 1) // 2, 8)
    if batch >= 16 and half < tb:
        tb = half
    b_pad = _round_up(batch, tb)
    if b_pad != batch:
        x = jnp.pad(x, ((0, b_pad - batch), (0, 0)))
    grid = (b_pad // tb,)

    flops = 2 * b_pad * (STATE_DIM * HIDDEN + HIDDEN * HIDDEN
                         + HIDDEN * N_ACTIONS)
    bytes_accessed = (
        4 * (b_pad * STATE_DIM + b_pad * N_ACTIONS)           # activations
        + 4 * (STATE_DIM * HIDDEN + HIDDEN + HIDDEN            # f32 params
               + N_ACTIONS * HIDDEN + N_ACTIONS)
        + w2.dtype.itemsize * HIDDEN * HIDDEN                  # w2 (f32 or bf16)
    )

    out = pl.pallas_call(
        mlp_kernel,
        out_shape=jax.ShapeDtypeStruct((b_pad, N_ACTIONS), jnp.float32),
        grid=grid,
        in_specs=[
            pl.BlockSpec((tb, STATE_DIM), lambda b: (b, 0)),       # x: batch-tiled
            pl.BlockSpec((STATE_DIM, HIDDEN), lambda b: (0, 0)),   # weights/biases:
            pl.BlockSpec((1, HIDDEN), lambda b: (0, 0)),           #   VMEM-resident
            pl.BlockSpec((HIDDEN, HIDDEN), lambda b: (0, 0)),      #   across steps
            pl.BlockSpec((1, HIDDEN), lambda b: (0, 0)),
            pl.BlockSpec((N_ACTIONS, HIDDEN), lambda b: (0, 0)),
            pl.BlockSpec((1, N_ACTIONS), lambda b: (0, 0)),
        ],
        out_specs=pl.BlockSpec((tb, N_ACTIONS), lambda b: (b, 0)),
        compiler_params=pltpu.CompilerParams(
            dimension_semantics=("parallel",)),
        cost_estimate=pl.CostEstimate(
            flops=flops, transcendentals=0, bytes_accessed=bytes_accessed),
    )(x, w1, b1, w2, b2, w3t, b3)

    return out[:batch]


def init_params(key):
    """Deterministic init mimicking nn.Linear's U(-1/sqrt(fan_in), 1/sqrt(fan_in))."""
    ks = jax.random.split(key, 6)

    def linear(kw, kb, fan_in, fan_out):
        bound = 1.0 / jnp.sqrt(float(fan_in))
        # Stored as [in, out] (transpose of PyTorch's [out, in]) for x @ W.
        w = jax.random.uniform(kw, (fan_in, fan_out), jnp.float32, -bound, bound)
        b = jax.random.uniform(kb, (1, fan_out), jnp.float32, -bound, bound)
        return w, b

    w1, b1 = linear(ks[0], ks[1], STATE_DIM, HIDDEN)
    w2, b2 = linear(ks[2], ks[3], HIDDEN, HIDDEN)
    w3, b3 = linear(ks[4], ks[5], HIDDEN, N_ACTIONS)
    return (w1, b1, w2, b2, w3, b3)


def reference_forward(x, params):
    w1, b1, w2, b2, w3, b3 = params
    h1 = _leaky_relu(x @ w1 + b1)
    h2 = _leaky_relu(h1 @ w2 + b2)
    return h2 @ w3 + b3


if __name__ == "__main__":
    key = jax.random.PRNGKey(0)
    k_params, k_x = jax.random.split(key)

    params = init_params(k_params)
    prepared = prepare_params(params)                      # exact f32 path

    # Small test: batch=48.
    batch = 48
    x = jax.random.normal(k_x, (batch, STATE_DIM), dtype=jnp.float32)
    ref = reference_forward(x, params)

    # block_batch=16 -> tb=16, grid=(3,): exercises multi-step batch grid with
    # VMEM-resident weights.
    logits = cartpole_agent_forward(x, prepared, block_batch=16)
    logits = jax.block_until_ready(logits)
    assert logits.shape == (batch, N_ACTIONS)
    assert jnp.allclose(logits, ref, atol=1e-5, rtol=1e-5), "mismatch vs. JAX reference"

    # Default block_batch (1024) -> tb capped at ceil(batch/2)=24, grid=(2,)
    # (the megacore >=2-step path).
    logits_def = cartpole_agent_forward(x, prepared)
    logits_def = jax.block_until_ready(logits_def)
    assert jnp.allclose(logits_def, ref, atol=1e-5, rtol=1e-5), "mismatch (default tile)"

    # Non-multiple batch (hits the batch-padding + slice-back path).
    logits_small = cartpole_agent_forward(x[:10], prepared, block_batch=16)
    logits_small = jax.block_until_ready(logits_small)
    assert logits_small.shape == (10, N_ACTIONS)
    assert jnp.allclose(logits_small, ref[:10], atol=1e-5, rtol=1e-5), "mismatch (padded batch)"

    # Optional bf16 MXU path (v6e/v7x fast path) — looser tolerance by design.
    prepared_bf16 = prepare_params(params, use_bf16=True)
    logits_bf16 = cartpole_agent_forward(x, prepared_bf16)
    logits_bf16 = jax.block_until_ready(logits_bf16)
    assert logits_bf16.shape == (batch, N_ACTIONS)
    assert jnp.allclose(logits_bf16, ref, atol=5e-2, rtol=5e-2), "mismatch (bf16 path)"

    print("KERNEL_OK")
</pallas_src>

<mosaic_0001>
module attributes {stable_mosaic.version = 11 : i64} {
  func.func @mlp_kernel(%arg0: i32, %arg1: memref<16x4xf32, #tpu.memory_space<vmem>>, %arg2: memref<4x128xf32, #tpu.memory_space<vmem>>, %arg3: memref<1x128xf32, #tpu.memory_space<vmem>>, %arg4: memref<128x128xf32, #tpu.memory_space<vmem>>, %arg5: memref<1x128xf32, #tpu.memory_space<vmem>>, %arg6: memref<2x128xf32, #tpu.memory_space<vmem>>, %arg7: memref<1x2xf32, #tpu.memory_space<vmem>>, %arg8: memref<16x2xf32, #tpu.memory_space<vmem>>) attributes {dimension_semantics = [#tpu.dimension_semantics<parallel>], iteration_bounds = array<i64: 3>, scalar_prefetch = 0 : i64, scratch_operands = 0 : i64, tpu.core_type = #tpu.core_type<tc>, window_params = [{transform_indices = @transform_0, window_bounds = array<i64: 16, 4>}, {pipeline_mode = #tpu.pipeline_mode<synchronous>, transform_indices = @transform_1, window_bounds = array<i64: 4, 128>}, {pipeline_mode = #tpu.pipeline_mode<synchronous>, transform_indices = @transform_2, window_bounds = array<i64: 1, 128>}, {pipeline_mode = #tpu.pipeline_mode<synchronous>, transform_indices = @transform_3, window_bounds = array<i64: 128, 128>}, {pipeline_mode = #tpu.pipeline_mode<synchronous>, transform_indices = @transform_4, window_bounds = array<i64: 1, 128>}, {pipeline_mode = #tpu.pipeline_mode<synchronous>, transform_indices = @transform_5, window_bounds = array<i64: 2, 128>}, {pipeline_mode = #tpu.pipeline_mode<synchronous>, transform_indices = @transform_6, window_bounds = array<i64: 1, 2>}, {transform_indices = @transform_7, window_bounds = array<i64: 16, 2>}]} {
    %c0 = arith.constant 0 : index
    %c0_0 = arith.constant 0 : index
    %0 = vector.load %arg1[%c0, %c0_0] : memref<16x4xf32, #tpu.memory_space<vmem>>, vector<16x4xf32>
    %c0_1 = arith.constant 0 : index
    %c0_2 = arith.constant 0 : index
    %1 = vector.load %arg2[%c0_1, %c0_2] : memref<4x128xf32, #tpu.memory_space<vmem>>, vector<4x128xf32>
    %c0_3 = arith.constant 0 : index
    %c0_4 = arith.constant 0 : index
    %2 = vector.load %arg3[%c0_3, %c0_4] : memref<1x128xf32, #tpu.memory_space<vmem>>, vector<1x128xf32>
    %3 = vector.shape_cast %2 : vector<1x128xf32> to vector<1x128xf32>
    %4 = vector.broadcast %3 : vector<1x128xf32> to vector<16x128xf32>
    %5 = vector.extract_strided_slice %0 {offsets = [0, 0], sizes = [16, 1], strides = [1, 1]} : vector<16x4xf32> to vector<16x1xf32>
    %6 = vector.extract_strided_slice %1 {offsets = [0, 0], sizes = [1, 128], strides = [1, 1]} : vector<4x128xf32> to vector<1x128xf32>
    %7 = vector.broadcast %5 : vector<16x1xf32> to vector<16x128xf32>
    %8 = vector.broadcast %6 : vector<1x128xf32> to vector<16x128xf32>
    %9 = arith.mulf %7, %8 : vector<16x128xf32>
    %10 = arith.addf %4, %9 : vector<16x128xf32>
    %11 = vector.extract_strided_slice %0 {offsets = [0, 1], sizes = [16, 1], strides = [1, 1]} : vector<16x4xf32> to vector<16x1xf32>
    %12 = vector.extract_strided_slice %1 {offsets = [1, 0], sizes = [1, 128], strides = [1, 1]} : vector<4x128xf32> to vector<1x128xf32>
    %13 = vector.broadcast %11 : vector<16x1xf32> to vector<16x128xf32>
    %14 = vector.broadcast %12 : vector<1x128xf32> to vector<16x128xf32>
    %15 = arith.mulf %13, %14 : vector<16x128xf32>
    %16 = arith.addf %10, %15 : vector<16x128xf32>
    %17 = vector.extract_strided_slice %0 {offsets = [0, 2], sizes = [16, 1], strides = [1, 1]} : vector<16x4xf32> to vector<16x1xf32>
    %18 = vector.extract_strided_slice %1 {offsets = [2, 0], sizes = [1, 128], strides = [1, 1]} : vector<4x128xf32> to vector<1x128xf32>
    %19 = vector.broadcast %17 : vector<16x1xf32> to vector<16x128xf32>
    %20 = vector.broadcast %18 : vector<1x128xf32> to vector<16x128xf32>
    %21 = arith.mulf %19, %20 : vector<16x128xf32>
    %22 = arith.addf %16, %21 : vector<16x128xf32>
    %23 = vector.extract_strided_slice %0 {offsets = [0, 3], sizes = [16, 1], strides = [1, 1]} : vector<16x4xf32> to vector<16x1xf32>
    %24 = vector.extract_strided_slice %1 {offsets = [3, 0], sizes = [1, 128], strides = [1, 1]} : vector<4x128xf32> to vector<1x128xf32>
    %25 = vector.broadcast %23 : vector<16x1xf32> to vector<16x128xf32>
    %26 = vector.broadcast %24 : vector<1x128xf32> to vector<16x128xf32>
    %27 = arith.mulf %25, %26 : vector<16x128xf32>
    %28 = arith.addf %22, %27 : vector<16x128xf32>
    %cst = arith.constant 0.000000e+00 : f32
    %29 = vector.broadcast %cst : f32 to vector<16x128xf32>
    %30 = arith.cmpf ogt, %28, %29 : vector<16x128xf32>
    %cst_5 = arith.constant 0.00999999977 : f32
    %31 = vector.broadcast %cst_5 : f32 to vector<16x128xf32>
    %32 = arith.mulf %31, %28 : vector<16x128xf32>
    %33 = arith.select %30, %28, %32 : vector<16x128xi1>, vector<16x128xf32>
    %c0_6 = arith.constant 0 : index
    %c0_7 = arith.constant 0 : index
    %34 = vector.load %arg4[%c0_6, %c0_7] : memref<128x128xf32, #tpu.memory_space<vmem>>, vector<128x128xf32>
    %cst_8 = arith.constant dense<0.000000e+00> : vector<16x128xf32>
    %35 = tpu.matmul %33, %34, %cst_8 {dimension_numbers = #tpu.dot_dimension_numbers<[1], [0], [0], [1], [0, 0, 1, 1], [], []>} : vector<16x128xf32>, vector<128x128xf32>, vector<16x128xf32> -> vector<16x128xf32>
    %c0_9 = arith.constant 0 : index
    %c0_10 = arith.constant 0 : index
    %36 = vector.load %arg5[%c0_9, %c0_10] : memref<1x128xf32, #tpu.memory_space<vmem>>, vector<1x128xf32>
    %37 = vector.broadcast %36 : vector<1x128xf32> to vector<16x128xf32>
    %38 = arith.addf %35, %37 : vector<16x128xf32>
    %cst_11 = arith.constant 0.000000e+00 : f32
    %39 = vector.broadcast %cst_11 : f32 to vector<16x128xf32>
    %40 = arith.cmpf ogt, %38, %39 : vector<16x128xf32>
    %cst_12 = arith.constant 0.00999999977 : f32
    %41 = vector.broadcast %cst_12 : f32 to vector<16x128xf32>
    %42 = arith.mulf %41, %38 : vector<16x128xf32>
    %43 = arith.select %40, %38, %42 : vector<16x128xi1>, vector<16x128xf32>
    %c0_13 = arith.constant 0 : index
    %c0_14 = arith.constant 0 : index
    %44 = vector.load %arg6[%c0_13, %c0_14] : memref<2x128xf32, #tpu.memory_space<vmem>>, vector<2x128xf32>
    %c0_15 = arith.constant 0 : index
    %c0_16 = arith.constant 0 : index
    %45 = vector.load %arg7[%c0_15, %c0_16] : memref<1x2xf32, #tpu.memory_space<vmem>>, vector<1x2xf32>
    %46 = vector.extract_strided_slice %44 {offsets = [0, 0], sizes = [1, 128], strides = [1, 1]} : vector<2x128xf32> to vector<1x128xf32>
    %47 = vector.broadcast %46 : vector<1x128xf32> to vector<16x128xf32>
    %48 = arith.mulf %43, %47 : vector<16x128xf32>
    %cst_17 = arith.constant dense<0.000000e+00> : vector<16xf32>
    %49 = vector.multi_reduction <add>, %48, %cst_17 [1] : vector<16x128xf32> to vector<16xf32>
    %50 = vector.shape_cast %49 : vector<16xf32> to vector<16x1xf32>
    %51 = vector.extract_strided_slice %44 {offsets = [1, 0], sizes = [1, 128], strides = [1, 1]} : vector<2x128xf32> to vector<1x128xf32>
    %52 = vector.broadcast %51 : vector<1x128xf32> to vector<16x128xf32>
    %53 = arith.mulf %43, %52 : vector<16x128xf32>
    %cst_18 = arith.constant dense<0.000000e+00> : vector<16xf32>
    %54 = vector.multi_reduction <add>, %53, %cst_18 [1] : vector<16x128xf32> to vector<16xf32>
    %55 = vector.shape_cast %54 : vector<16xf32> to vector<16x1xf32>
    %56 = tpu.concatenate %50, %55 in 1 : vector<16x1xf32>, vector<16x1xf32> -> vector<16x2xf32>
    %57 = vector.broadcast %45 : vector<1x2xf32> to vector<16x2xf32>
    %58 = arith.addf %56, %57 : vector<16x2xf32>
    %c0_19 = arith.constant 0 : index
    %c0_20 = arith.constant 0 : index
    %59 = vector.load %arg8[%c0_19, %c0_20] : memref<16x2xf32, #tpu.memory_space<vmem>>, vector<16x2xf32>
    tpu.vector_store %arg8[%c0_19, %c0_20], %58 {strides = array<i32>} : memref<16x2xf32, #tpu.memory_space<vmem>>, vector<16x2xf32>,
    return
  }
  func.func @transform_0(%arg0: i32) -> (i32, i32) {
    %c0_i32 = arith.constant 0 : i32
    %c0_i32_0 = arith.constant 0 : i32
    return %arg0, %c0_i32 : i32, i32
  }
  func.func @transform_1(%arg0: i32) -> (i32, i32) {
    %c0_i32 = arith.constant 0 : i32
    %c0_i32_0 = arith.constant 0 : i32
    %c0_i32_1 = arith.constant 0 : i32
    return %c0_i32, %c0_i32_0 : i32, i32
  }
  func.func @transform_2(%arg0: i32) -> (i32, i32) {
    %c0_i32 = arith.constant 0 : i32
    %c0_i32_0 = arith.constant 0 : i32
    %c0_i32_1 = arith.constant 0 : i32
    return %c0_i32, %c0_i32_0 : i32, i32
  }
  func.func @transform_3(%arg0: i32) -> (i32, i32) {
    %c0_i32 = arith.constant 0 : i32
    %c0_i32_0 = arith.constant 0 : i32
    %c0_i32_1 = arith.constant 0 : i32
    return %c0_i32, %c0_i32_0 : i32, i32
  }
  func.func @transform_4(%arg0: i32) -> (i32, i32) {
    %c0_i32 = arith.constant 0 : i32
    %c0_i32_0 = arith.constant 0 : i32
    %c0_i32_1 = arith.constant 0 : i32
    return %c0_i32, %c0_i32_0 : i32, i32
  }
  func.func @transform_5(%arg0: i32) -> (i32, i32) {
    %c0_i32 = arith.constant 0 : i32
    %c0_i32_0 = arith.constant 0 : i32
    %c0_i32_1 = arith.constant 0 : i32
    return %c0_i32, %c0_i32_0 : i32, i32
  }
  func.func @transform_6(%arg0: i32) -> (i32, i32) {
    %c0_i32 = arith.constant 0 : i32
    %c0_i32_0 = arith.constant 0 : i32
    %c0_i32_1 = arith.constant 0 : i32
    return %c0_i32, %c0_i32_0 : i32, i32
  }
  func.func @transform_7(%arg0: i32) -> (i32, i32) {
    %c0_i32 = arith.constant 0 : i32
    %c0_i32_0 = arith.constant 0 : i32
    return %arg0, %c0_i32 : i32, i32
  }
}

</mosaic_0001>

<llo_original>
// kernel: tpu_custom_call.1
$region0: #{tpu_custom_call.1}
  #allocation0 [shape = 'u32[]', space=smem, size = 0x4, offset = 0x4, fixed_abs, tag = 'smem constant byte address 0x4 - core index']
  #allocation1 [shape = 'u32[72,128]{1,0:T(1,128)}', space=vmem, size = 0x9000, scoped, tag = 'internal scratch']
  %s0 = inlined_call_operand.vmem [shape: f32[48,4], index: 0, kind: input, shape index: {}]
  %s1 = inlined_call_operand.vmem [shape: f32[4,128], index: 1, kind: input, shape index: {}]
  %s2 = inlined_call_operand.vmem [shape: f32[1,128], index: 2, kind: input, shape index: {}]
  %s3 = inlined_call_operand.hbm [shape: f32[128,128], index: 3, kind: input, shape index: {}]
  %s4 = inlined_call_operand.vmem [shape: f32[1,128], index: 4, kind: input, shape index: {}]
  %s5 = inlined_call_operand.vmem [shape: f32[2,128], index: 5, kind: input, shape index: {}]
  %s6 = inlined_call_operand.vmem [shape: f32[1,2], index: 6, kind: input, shape index: {}]
  %s7 = inlined_call_operand.vmem [shape: f32[48,2], index: 7, kind: output, shape index: {}]
  %s8 = sld [smem:[#allocation0]]
  $region65: #{tpu_custom_call.1} parent=0
    _
  %s10 = ssub.s32 1, %s8
  %s11 = scalar_select 0, %s10, %s8
  $region1: #{tpu_custom_call.1} parent=0
    #allocation2 [shape = 'u8[65536]{0}', space=vmem, size = 0x10000, scoped, tag = 'input window, operand 3, single buffered']
    #allocation3 [shape = 's32[2]{0}', space=sflag, size = 0x8, scoped, tag = 'scoped memory for tpu_custom_call.1']
    %12 = vsyncpa [#allocation3], 0
    loop: start=0, step=1, limit=5
    $region2: #{tpu_custom_call.1} parent=1 // loop_pre_header
      _
    $region3: #{tpu_custom_call.1} parent=1 // loop_header
      %s14 = sphi 0, %s18
      %p15 = scmp.ge.s32.totalorder %s14, 5
      %s24 = sphi 0, %s26
      %s27 = sphi 0, %s24
      %s28 = sphi 0, %s27
      %s44 = sphi 0, %s28
      %s48 = sphi 0, %s48
      %s50 = sphi 0, %s48
      %s51 = sphi 0, %s50
      %s65 = sphi 0, %s51
      %s69 = sphi 0, %s69
      %s71 = sphi 0, %s69
      %s72 = sphi 0, %s71
      %s86 = sphi 0, %s72
      %s90 = sphi 0, %s90
      %s92 = sphi 0, %s90
      %s93 = sphi 0, %s92
      %s107 = sphi 0, %s93
      %s111 = sphi 0, %s111
      %s113 = sphi 0, %s111
      %s114 = sphi 0, %s113
      %s128 = sphi 0, %s114
      %s132 = sphi 0, %s132
      %s134 = sphi 0, %s132
      %s135 = sphi 0, %s134
      %s149 = sphi 0, %s135
      %s153 = sphi 0, %s153
      %s155 = sphi 0, %s153
      %s156 = sphi 0, %s155
      %s170 = sphi 0, %s156
      %s176 = sphi 0, %s178
      %s179 = sphi 0, %s176
      %s180 = sphi 0, %s179
      %s196 = sphi 0, %s180
    $region4: #{tpu_custom_call.1} parent=1 // loop_header_branch
      %17 = sbr.rel (%p15) target = $region8
    $region5: #{tpu_custom_call.1} parent=1 // loop_body
      %s19 = ssub.s32 %s14, 1
      %s20 = ssub.s32 %s14, 2
      %s21 = sadd.s32 %s14, 1
      %s22 = ssub.s32 %s14, %s21
      %p23 = scmp.eq.s32.totalorder %s22, 0
      %s25 = sadd.s32 %s24, 1
      %s26 = scalar_select %p23, %s24, %s25
      %p29 = pneg %p23
      %p30 = scmp.eq.s32.totalorder %s14, 2
      %p31 = por %p29, %p30
      %p32 = scmp.ne.s32.totalorder %s24, %s27
      %p33 = scmp.eq.s32.totalorder %s14, 0
      %p34 = por %p32, %p33
      %p35 = scmp.ne.s32.totalorder %s24, %s27
      %p36 = scmp.eq.s32.totalorder %s19, 2
      %p37 = por %p35, %p36
      %p38 = scmp.ne.s32.totalorder %s27, %s28
      %p39 = scmp.eq.s32.totalorder %s19, 0
      %p40 = por %p38, %p39
      %p41 = scmp.ne.s32.totalorder %s27, %s28
      %p42 = scmp.eq.s32.totalorder %s20, 2
      %p43 = por %p41, %p42
      %p45 = scmp.ne.s32.totalorder %s28, %s44
      %p46 = scmp.eq.s32.totalorder %s20, 0
      %p47 = por %p45, %p46
      %s49 = sadd.s32 %s48, 1
      %p52 = scmp.eq.s32.totalorder %s14, 2
      %p53 = scmp.ne.s32.totalorder %s48, %s50
      %p54 = scmp.eq.s32.totalorder %s14, 0
      %p55 = por %p53, %p54
      %p56 = scmp.ne.s32.totalorder %s48, %s50
      %p57 = scmp.eq.s32.totalorder %s19, 2
      %p58 = por %p56, %p57
      %p59 = scmp.ne.s32.totalorder %s50, %s51
      %p60 = scmp.eq.s32.totalorder %s19, 0
      %p61 = por %p59, %p60
      %p62 = scmp.ne.s32.totalorder %s50, %s51
      %p63 = scmp.eq.s32.totalorder %s20, 2
      %p64 = por %p62, %p63
      %p66 = scmp.ne.s32.totalorder %s51, %s65
      %p67 = scmp.eq.s32.totalorder %s20, 0
      %p68 = por %p66, %p67
      %s70 = sadd.s32 %s69, 1
      %p73 = scmp.eq.s32.totalorder %s14, 2
      %p74 = scmp.ne.s32.totalorder %s69, %s71
      %p75 = scmp.eq.s32.totalorder %s14, 0
      %p76 = por %p74, %p75
      %p77 = scmp.ne.s32.totalorder %s69, %s71
      %p78 = scmp.eq.s32.totalorder %s19, 2
      %p79 = por %p77, %p78
      %p80 = scmp.ne.s32.totalorder %s71, %s72
      %p81 = scmp.eq.s32.totalorder %s19, 0
      %p82 = por %p80, %p81
      %p83 = scmp.ne.s32.totalorder %s71, %s72
      %p84 = scmp.eq.s32.totalorder %s20, 2
      %p85 = por %p83, %p84
      %p87 = scmp.ne.s32.totalorder %s72, %s86
      %p88 = scmp.eq.s32.totalorder %s20, 0
      %p89 = por %p87, %p88
      %s91 = sadd.s32 %s90, 1
      %p94 = scmp.eq.s32.totalorder %s14, 2
      %p95 = scmp.ne.s32.totalorder %s90, %s92
      %p96 = scmp.eq.s32.totalorder %s14, 0
      %p97 = por %p95, %p96
      %p98 = scmp.ne.s32.totalorder %s90, %s92
      %p99 = scmp.eq.s32.totalorder %s19, 2
      %p100 = por %p98, %p99
      %p101 = scmp.ne.s32.totalorder %s92, %s93
      %p102 = scmp.eq.s32.totalorder %s19, 0
      %p103 = por %p101, %p102
      %p104 = scmp.ne.s32.totalorder %s92, %s93
      %p105 = scmp.eq.s32.totalorder %s20, 2
      %p106 = por %p104, %p105
      %p108 = scmp.ne.s32.totalorder %s93, %s107
      %p109 = scmp.eq.s32.totalorder %s20, 0
      %p110 = por %p108, %p109
      %s112 = sadd.s32 %s111, 1
      %p115 = scmp.eq.s32.totalorder %s14, 2
      %p116 = scmp.ne.s32.totalorder %s111, %s113
      %p117 = scmp.eq.s32.totalorder %s14, 0
      %p118 = por %p116, %p117
      %p119 = scmp.ne.s32.totalorder %s111, %s113
      %p120 = scmp.eq.s32.totalorder %s19, 2
      %p121 = por %p119, %p120
      %p122 = scmp.ne.s32.totalorder %s113, %s114
      %p123 = scmp.eq.s32.totalorder %s19, 0
      %p124 = por %p122, %p123
      %p125 = scmp.ne.s32.totalorder %s113, %s114
      %p126 = scmp.eq.s32.totalorder %s20, 2
      %p127 = por %p125, %p126
      %p129 = scmp.ne.s32.totalorder %s114, %s128
      %p130 = scmp.eq.s32.totalorder %s20, 0
      %p131 = por %p129, %p130
      %s133 = sadd.s32 %s132, 1
      %p136 = scmp.eq.s32.totalorder %s14, 2
      %p137 = scmp.ne.s32.totalorder %s132, %s134
      %p138 = scmp.eq.s32.totalorder %s14, 0
      %p139 = por %p137, %p138
      %p140 = scmp.ne.s32.totalorder %s132, %s134
      %p141 = scmp.eq.s32.totalorder %s19, 2
      %p142 = por %p140, %p141
      %p143 = scmp.ne.s32.totalorder %s134, %s135
      %p144 = scmp.eq.s32.totalorder %s19, 0
      %p145 = por %p143, %p144
      %p146 = scmp.ne.s32.totalorder %s134, %s135
      %p147 = scmp.eq.s32.totalorder %s20, 2
      %p148 = por %p146, %p147
      %p150 = scmp.ne.s32.totalorder %s135, %s149
      %p151 = scmp.eq.s32.totalorder %s20, 0
      %p152 = por %p150, %p151
      %s154 = sadd.s32 %s153, 1
      %p157 = scmp.eq.s32.totalorder %s14, 2
      %p158 = scmp.ne.s32.totalorder %s153, %s155
      %p159 = scmp.eq.s32.totalorder %s14, 0
      %p160 = por %p158, %p159
      %p161 = scmp.ne.s32.totalorder %s153, %s155
      %p162 = scmp.eq.s32.totalorder %s19, 2
      %p163 = por %p161, %p162
      %p164 = scmp.ne.s32.totalorder %s155, %s156
      %p165 = scmp.eq.s32.totalorder %s19, 0
      %p166 = por %p164, %p165
      %p167 = scmp.ne.s32.totalorder %s155, %s156
      %p168 = scmp.eq.s32.totalorder %s20, 2
      %p169 = por %p167, %p168
      %p171 = scmp.ne.s32.totalorder %s156, %s170
      %p172 = scmp.eq.s32.totalorder %s20, 0
      %p173 = por %p171, %p172
      %s174 = ssub.s32 %s14, %s21
      %p175 = scmp.eq.s32.totalorder %s174, 0
      %s177 = sadd.s32 %s176, 1
      %s178 = scalar_select %p175, %s176, %s177
      %p181 = pneg %p175
      %p182 = scmp.eq.s32.totalorder %s14, 2
      %p183 = por %p181, %p182
      %p184 = scmp.ne.s32.totalorder %s176, %s179
      %p185 = scmp.eq.s32.totalorder %s14, 0
      %p186 = por %p184, %p185
      %p187 = scmp.ne.s32.totalorder %s176, %s179
      %p188 = scmp.eq.s32.totalorder %s19, 2
      %p189 = por %p187, %p188
      %p190 = scmp.ne.s32.totalorder %s179, %s180
      %p191 = scmp.eq.s32.totalorder %s19, 0
      %p192 = por %p190, %p191
      %p193 = scmp.ne.s32.totalorder %s179, %s180
      %p194 = scmp.eq.s32.totalorder %s20, 2
      %p195 = por %p193, %p194
      %p197 = scmp.ne.s32.totalorder %s180, %s196
      %p198 = scmp.eq.s32.totalorder %s20, 0
      %p199 = por %p197, %p198
      %p200 = scmp.le.s32.totalorder 1, %s14
      %p201 = scmp.lt.s32.totalorder %s14, 4
      %p202 = pnand %p200, %p201
      %p203 = pneg %p202
      // Predicated region
      $region9: #{tpu_custom_call.1} parent=5 // pred_check
        _
      $region10: #{tpu_custom_call.1} parent=5 // pred_check_branch
        %205 = sbr.rel (%p202) target = $region12
      $region11: #{tpu_custom_call.1} parent=5 // pred_region
        %s206 = ssub.s32 %s14, 1
        // Predicated region
        $region13: #{tpu_custom_call.1} parent=11 // pred_check
          %p207 = pneg %p61
        $region14: #{tpu_custom_call.1} parent=11 // pred_check_branch
          %209 = sbr.rel (%p207) target = $region16
        $region15: #{tpu_custom_call.1} parent=11 // pred_region
          _
        $region16: #{tpu_custom_call.1} parent=11 // pred_fallthru
          _
        // Predicated region
        $region17: #{tpu_custom_call.1} parent=11 // pred_check
          %p210 = pneg %p82
        $region18: #{tpu_custom_call.1} parent=11 // pred_check_branch
          %212 = sbr.rel (%p210) target = $region20
        $region19: #{tpu_custom_call.1} parent=11 // pred_region
          _
        $region20: #{tpu_custom_call.1} parent=11 // pred_fallthru
          _
        // Predicated region
        $region21: #{tpu_custom_call.1} parent=11 // pred_check
          %p213 = pneg %p103
        $region22: #{tpu_custom_call.1} parent=11 // pred_check_branch
          %215 = sbr.rel (%p213) target = $region24
        $region23: #{tpu_custom_call.1} parent=11 // pred_region
          %217 = vsyncadd [#allocation3], 0
          %s218 = sshll.u32 %s3, 4
          %s219 = int_to_ptr.hbm [resolvable:$true] %s218
          %s220 = sshll.u32 [#allocation2], 4
          %s221 = int_to_ptr.vmem [resolvable:$true] %s220
          %226 = dma.hbm_to_vmem [thread:$0]  %s219, 2048, %s221, [#allocation3], 128, 128, 8
        $region24: #{tpu_custom_call.1} parent=11 // pred_fallthru
          _
        // Predicated region
        $region25: #{tpu_custom_call.1} parent=11 // pred_check
          %p227 = pneg %p124
        $region26: #{tpu_custom_call.1} parent=11 // pred_check_branch
          %229 = sbr.rel (%p227) target = $region28
        $region27: #{tpu_custom_call.1} parent=11 // pred_region
          _
        $region28: #{tpu_custom_call.1} parent=11 // pred_fallthru
          _
        // Predicated region
        $region29: #{tpu_custom_call.1} parent=11 // pred_check
          %p230 = pneg %p145
        $region30: #{tpu_custom_call.1} parent=11 // pred_check_branch
          %232 = sbr.rel (%p230) target = $region32
        $region31: #{tpu_custom_call.1} parent=11 // pred_region
          _
        $region32: #{tpu_custom_call.1} parent=11 // pred_fallthru
          _
        // Predicated region
        $region33: #{tpu_custom_call.1} parent=11 // pred_check
          %p233 = pneg %p166
        $region34: #{tpu_custom_call.1} parent=11 // pred_check_branch
          %235 = sbr.rel (%p233) target = $region36
        $region35: #{tpu_custom_call.1} parent=11 // pred_region
          _
        $region36: #{tpu_custom_call.1} parent=11 // pred_fallthru
          _
      $region12: #{tpu_custom_call.1} parent=5 // pred_fallthru
        _
      %p236 = scmp.lt.s32.totalorder %s14, 3
      // Predicated region
      $region37: #{tpu_custom_call.1} parent=5 // pred_check
        %p237 = pneg %p236
      $region38: #{tpu_custom_call.1} parent=5 // pred_check_branch
        %239 = sbr.rel (%p237) target = $region40
      $region39: #{tpu_custom_call.1} parent=5 // pred_region
        // Predicated region
        $region41: #{tpu_custom_call.1} parent=39 // pred_check
          %p240 = pneg %p34
        $region42: #{tpu_custom_call.1} parent=39 // pred_check_branch
          %242 = sbr.rel (%p240) target = $region44
        $region43: #{tpu_custom_call.1} parent=39 // pred_region
          %s243 = smul.u32 2, %s14
          %p244 = scmp.lt.s32.totalorder %s243, 5
          %s245 = scalar_select %p244, %s243, 5
          %s246 = smul.addr %s245, 8
          %s247 = scalar_lea.vmem %s0, %s246
          %s248 = smul.u32 2, %s14
        $region44: #{tpu_custom_call.1} parent=39 // pred_fallthru
          _
      $region40: #{tpu_custom_call.1} parent=5 // pred_fallthru
        _
      %p249 = scmp.le.s32.totalorder 1, %s14
      %p250 = scmp.lt.s32.totalorder %s14, 4
      %p251 = pnand %p249, %p250
      %p252 = pneg %p251
      // Predicated region
      $region45: #{tpu_custom_call.1} parent=5 // pred_check
        _
      $region46: #{tpu_custom_call.1} parent=5 // pred_check_branch
        %254 = sbr.rel (%p251) target = $region48
      $region47: #{tpu_custom_call.1} parent=5 // pred_region
        %s255 = ssub.s32 %s14, 1
        // Predicated region
        $region49: #{tpu_custom_call.1} parent=47 // pred_check
          %p256 = pneg %p103
        $region50: #{tpu_custom_call.1} parent=47 // pred_check_branch
          %258 = sbr.rel (%p256) target = $region52
        $region51: #{tpu_custom_call.1} parent=47 // pred_region
          %260 = dma.done [#allocation3], 2048
        $region52: #{tpu_custom_call.1} parent=47 // pred_fallthru
          _
        %s261 = smul.u32 2, %s19
        %p262 = scmp.lt.s32.totalorder %s261, 5
        %s263 = scalar_select %p262, %s261, 5
        %s264 = smul.addr %s263, 8
        %s265 = scalar_lea.vmem %s0, %s264
        %p266 = pneg %p40
        %p267 = pneg %p37
        %p268 = pneg %p61
        %p269 = pneg %p58
        %p270 = pneg %p82
        %p271 = pneg %p79
        %p272 = pneg %p103
        %p273 = pneg %p100
        %p274 = pneg %p124
        %p275 = pneg %p121
        %p276 = pneg %p145
        %p277 = pneg %p142
        %p278 = pneg %p166
        %p279 = pneg %p163
        %p280 = pneg %p192
        %p281 = pneg %p189
        %s282 = smul.u32 2, %s19
        %p283 = scmp.lt.s32.totalorder %s282, 5
        %s284 = scalar_select %p283, %s282, 5
        %s285 = smul.addr %s284, 8
        %s286 = scalar_lea.vmem %s7, %s285
        %s287 = smul.u32 2, %s19
        %p288 = scmp.lt.s32.totalorder %s287, 5
        %s289 = scalar_select %p288, %s287, 5
        %s290 = smul.addr %s289, 8
        %s291 = scalar_lea.vmem %s0, %s290
        %s292 = smul.u32 2, %s19
        %s293 = smul.u32 2, %s19
        %p294 = scmp.lt.s32.totalorder %s293, 5
        %s295 = scalar_select %p294, %s293, 5
        %s296 = smul.addr %s295, 8
        %s297 = scalar_lea.vmem %s7, %s296
        %s298 = smul.u32 2, %s19
        %v299 = vld [vmem:[%s291] sm:$0xff]
        %v300 = vld [vmem:[%s291 + $0x8] sm:$0xff]
        %v301 = vld [vmem:[%s1] sm:$0xf]
        %v302 = vld [vmem:[%s2] sm:$0x1]
        %v304 = vperm.slane %v302, 0
        %307 = vset.pattern.permute.xlu0 0
        %308 = vperm.xlu0 %307, %v299
        %v309 = vpop.permute.xlu0 %308
        %312 = vset.pattern.permute.xlu0 0
        %313 = vperm.xlu0 %312, %v300
        %v314 = vpop.permute.xlu0 %313
        %v316 = vperm.slane %v301, 0
        %v317 = vmul.f32 %v309, %v316
        %v318 = vmul.f32 %v314, %v316
        %v319 = vadd.f32 %v304, %v317
        %v320 = vadd.f32 %v304, %v318
        %321 = vset.pattern.permute.xlu0 1
        %322 = vperm.xlu0 %321, %v299
        %v323 = vpop.permute.xlu0 %322
        %325 = vset.pattern.permute.xlu0 1
        %326 = vperm.xlu0 %325, %v300
        %v327 = vpop.permute.xlu0 %326
        %v329 = vperm.slane %v301, 1
        %v330 = vmul.f32 %v323, %v329
        %v331 = vmul.f32 %v327, %v329
        %v332 = vadd.f32 %v319, %v330
        %v333 = vadd.f32 %v320, %v331
        %334 = vset.pattern.permute.xlu0 2
        %335 = vperm.xlu0 %334, %v299
        %v336 = vpop.permute.xlu0 %335
        %338 = vset.pattern.permute.xlu0 2
        %339 = vperm.xlu0 %338, %v300
        %v340 = vpop.permute.xlu0 %339
        %v342 = vperm.slane %v301, 2
        %v343 = vmul.f32 %v336, %v342
        %v344 = vmul.f32 %v340, %v342
        %v345 = vadd.f32 %v332, %v343
        %v346 = vadd.f32 %v333, %v344
        %347 = vset.pattern.permute.xlu0 3
        %348 = vperm.xlu0 %347, %v299
        %v349 = vpop.permute.xlu0 %348
        %351 = vset.pattern.permute.xlu0 3
        %352 = vperm.xlu0 %351, %v300
        %v353 = vpop.permute.xlu0 %352
        %v355 = vperm.slane %v301, 3
        %v356 = vmul.f32 %v349, %v355
        %v357 = vmul.f32 %v353, %v355
        %v358 = vadd.f32 %v345, %v356
        %v359 = vadd.f32 %v346, %v357
        %vm360 = vcmp.gt.f32.partialorder %v358, 0.0
        %vm361 = vcmp.gt.f32.partialorder %v359, 0.0
        %v362 = vmul.f32 %v358, 0.01
        %v363 = vmul.f32 %v359, 0.01
        %v364 = vsel %vm360, %v358, %v362
        %v365 = vsel %vm361, %v359, %v363
        %v366 = vld [vmem:[#allocation2] sm:$0xff]
        %v367 = vld [vmem:[#allocation2 + $0x8] sm:$0xff]
        %v368 = vld [vmem:[#allocation2 + $0x10] sm:$0xff]
        %v369 = vld [vmem:[#allocation2 + $0x18] sm:$0xff]
        %v370 = vld [vmem:[#allocation2 + $0x20] sm:$0xff]
        %v371 = vld [vmem:[#allocation2 + $0x28] sm:$0xff]
        %v372 = vld [vmem:[#allocation2 + $0x30] sm:$0xff]
        %v373 = vld [vmem:[#allocation2 + $0x38] sm:$0xff]
        %v374 = vld [vmem:[#allocation2 + $0x40] sm:$0xff]
        %v375 = vld [vmem:[#allocation2 + $0x48] sm:$0xff]
        %v376 = vld [vmem:[#allocation2 + $0x50] sm:$0xff]
        %v377 = vld [vmem:[#allocation2 + $0x58] sm:$0xff]
        %v378 = vld [vmem:[#allocation2 + $0x60] sm:$0xff]
        %v379 = vld [vmem:[#allocation2 + $0x68] sm:$0xff]
        %v380 = vld [vmem:[#allocation2 + $0x70] sm:$0xff]
        %v381 = vld [vmem:[#allocation2 + $0x78] sm:$0xff]
        %v382 = vld [vmem:[%s4] sm:$0x1]
        %v384 = vperm.slane %v382, 0
        %386 = vmatpush.msra.mxu0 %v381
        %387 = vmatpush.msra.mxu0 %v380
        %388 = vmatpush.msra.mxu0 %v379
        %389 = vmatpush.msra.mxu0 %v378
        %390 = vmatpush.msra.mxu0 %v377
        %391 = vmatpush.msra.mxu0 %v376
        %392 = vmatpush.msra.mxu0 %v375
        %393 = vmatpush.msra.mxu0 %v374
        %394 = vmatpush.msra.mxu0 %v373
        %395 = vmatpush.msra.mxu0 %v372
        %396 = vmatpush.msra.mxu0 %v371
        %397 = vmatpush.msra.mxu0 %v370
        %398 = vmatpush.msra.mxu0 %v369
        %399 = vmatpush.msra.mxu0 %v368
        %400 = vmatpush.msra.mxu0 %v367
        %401 = vmatpush.msra.mxu0 %v366
        %402 = vmatmul.f32.gmra.mxu0 %v364
        %v403 = vpop.f32.mrf.mxu0
        %v404 = vadd.f32 %v384, %v403
        %405 = vmatmul.f32.gmra.mxu0 %v365
        %v406 = vpop.f32.mrf.mxu0
        %v407 = vadd.f32 %v384, %v406
        %408 = vdwg.mxu0
        %vm409 = vcmp.gt.f32.partialorder %v404, 0.0
        %vm410 = vcmp.gt.f32.partialorder %v407, 0.0
        %v411 = vmul.f32 %v404, 0.01
        %v412 = vmul.f32 %v407, 0.01
        %v413 = vsel %vm409, %v404, %v411
        %v414 = vsel %vm410, %v407, %v412
        %v415 = vld [vmem:[%s5] sm:$0x3]
        %v416 = vld [vmem:[%s6] sm:$0x1]
        %v417 = vperm.slane %v415, 0
        %v418 = vmul.f32 %v413, %v417
        %v419 = vmul.f32 %v414, %v417
        %420 = vadd.xlane.f32.xlu0 %v418
        %v421 = vpop.xlane.xlu0 %420
        %422 = vadd.xlane.f32.xlu0 %v419
        %v423 = vpop.xlane.xlu0 %422
        %v424 = vperm.slane %v415, 1
        %v425 = vmul.f32 %v413, %v424
        %v426 = vmul.f32 %v414, %v424
        %427 = vadd.xlane.f32.xlu0 %v425
        %v428 = vpop.xlane.xlu0 %427
        %429 = vadd.xlane.f32.xlu0 %v426
        %v430 = vpop.xlane.xlu0 %429
        %vm431 = vcmask 7168
        %v432 = vsel %vm431, %v421, %v428
        %v433 = vsel %vm431, %v423, %v430
        %v435 = vperm.slane %v416, 0
        %v437 = vadd.f32 %v432, %v435
        %v438 = vadd.f32 %v433, %v435
        %vm439 = vcmask 15360
        %440 = vst.msk [vmem:[%s297] sm:$0xff] %vm439, %v437
        %441 = vst.msk [vmem:[%s297 + $0x8] sm:$0xff] %vm439, %v438
        %s442 = smul.u32 2, %s19
        %p443 = scmp.lt.s32.totalorder %s442, 5
        %s444 = scalar_select %p443, %s442, 5
        %s445 = smul.addr %s444, 8
        %s446 = scalar_lea.vmem %s7, %s445
        // Predicated region
        $region53: #{tpu_custom_call.1} parent=47 // pred_check
          %p447 = pneg %p189
        $region54: #{tpu_custom_call.1} parent=47 // pred_check_branch
          %449 = sbr.rel (%p447) target = $region56
        $region55: #{tpu_custom_call.1} parent=47 // pred_region
          %s450 = smul.u32 2, %s19
        $region56: #{tpu_custom_call.1} parent=47 // pred_fallthru
          _
      $region48: #{tpu_custom_call.1} parent=5 // pred_fallthru
        _
      %p451 = scmp.le.s32.totalorder 2, %s14
      // Predicated region
      $region57: #{tpu_custom_call.1} parent=5 // pred_check
        %p452 = pneg %p451
      $region58: #{tpu_custom_call.1} parent=5 // pred_check_branch
        %454 = sbr.rel (%p452) target = $region60
      $region59: #{tpu_custom_call.1} parent=5 // pred_region
        %s455 = ssub.s32 %s14, 2
        // Predicated region
        $region61: #{tpu_custom_call.1} parent=59 // pred_check
          %p456 = pneg %p195
        $region62: #{tpu_custom_call.1} parent=59 // pred_check_branch
          %458 = sbr.rel (%p456) target = $region64
        $region63: #{tpu_custom_call.1} parent=59 // pred_region
          %s459 = smul.u32 2, %s20
          %p460 = scmp.lt.s32.totalorder %s459, 5
          %s461 = scalar_select %p460, %s459, 5
          %s462 = smul.addr %s461, 8
          %s463 = scalar_lea.vmem %s7, %s462
        $region64: #{tpu_custom_call.1} parent=59 // pred_fallthru
          _
      $region60: #{tpu_custom_call.1} parent=5 // pred_fallthru
        _
    $region6: #{tpu_custom_call.1} parent=1 // loop_footer
      %s18 = sadd.s32 1, %s14
    $region7: #{tpu_custom_call.1} parent=1 // loop_footer_branch
      %13 = sbr.rel target = $region3
    $region8: #{tpu_custom_call.1} parent=1 // loop_exit
      _
    %464 = vsyncpa [#allocation3], 1
    %s465 = scalar_lea.sflag [#allocation3], 1
    %466 = vsyncpa %s465, 1

</llo_original>
